<compile_context>
chip_gen: v7x
topology: tpu7x:2x2x1
jax: 0.10.0
libtpu: 0.0.40
codegen_flags: <defaults>
</compile_context>

<pallas_src>
from functools import partial

import jax
import jax.numpy as jnp
from jax.experimental import pallas as pl
from jax.experimental.pallas import tpu as pltpu


def _round_up(x, m):
    return ((x + m - 1) // m) * m


# -----------------------------------------------------------------------------
# Kernels
# -----------------------------------------------------------------------------
def _linear_kernel_single_k(x_ref, w_ref, b_ref, o_ref):
    # Whole K in one tile: single MXU pass + fused bias, direct store.
    o_ref[...] = (
        jnp.dot(x_ref[...], w_ref[...], preferred_element_type=jnp.float32)
        + b_ref[...]
    ).astype(o_ref.dtype)


def _linear_kernel_multi_k(x_ref, w_ref, b_ref, o_ref, acc_ref):
    k = pl.program_id(2)

    @pl.when(k == 0)
    def _():
        acc_ref[...] = jnp.zeros_like(acc_ref)

    acc_ref[...] += jnp.dot(x_ref[...], w_ref[...],
                            preferred_element_type=jnp.float32)

    @pl.when(k == pl.num_programs(2) - 1)
    def _():
        # Bias applied exactly once, on the final K step.
        o_ref[...] = (acc_ref[...] + b_ref[...]).astype(o_ref.dtype)


# -----------------------------------------------------------------------------
# Wrapper: y = x @ w + b,  x: (M, K), w: (K, N), b: (N,)  ->  (M, N), all f32.
# -----------------------------------------------------------------------------
@partial(jax.jit, static_argnames=("tm", "tn", "tk"))
def linear_pallas(x, w, b, *, tm=256, tn=512, tk=512):
    M, K = x.shape
    K2, N = w.shape
    assert K == K2 and b.shape == (N,)

    # Tile sizes: capped at (tm, tn, tk), otherwise the minimal (8, 128)-legal
    # block covering the whole dim.  Dims are zero-padded up to tile multiples
    # (exact for the matmul; padded rows/cols are sliced off).
    TM = min(tm, _round_up(M, 8))
    TN = min(tn, _round_up(N, 128))
    TK = min(tk, _round_up(K, 128))
    Mp, Np, Kp = _round_up(M, TM), _round_up(N, TN), _round_up(K, TK)

    xp = x if (Mp, Kp) == (M, K) else jnp.pad(x, ((0, Mp - M), (0, Kp - K)))
    wp = w if (Kp, Np) == (K, N) else jnp.pad(w, ((0, Kp - K), (0, Np - N)))
    bp = (b if Np == N else jnp.pad(b, (0, Np - N))).reshape(1, Np)

    kt = Kp // TK
    compiler_common = dict(vmem_limit_bytes=32 * 1024 * 1024)

    if kt == 1:
        # Single-K fast path: 2-D grid, no accumulator scratch.
        out = pl.pallas_call(
            _linear_kernel_single_k,
            out_shape=jax.ShapeDtypeStruct((Mp, Np), jnp.float32),
            grid_spec=pltpu.PrefetchScalarGridSpec(
                num_scalar_prefetch=0,
                grid=(Mp // TM, Np // TN),
                in_specs=[
                    pl.BlockSpec((TM, Kp), lambda i, j: (i, 0)),
                    pl.BlockSpec((Kp, TN), lambda i, j: (0, j)),
                    pl.BlockSpec((1, TN), lambda i, j: (0, j)),
                ],
                out_specs=pl.BlockSpec((TM, TN), lambda i, j: (i, j)),
            ),
            compiler_params=pltpu.CompilerParams(
                dimension_semantics=("parallel", "parallel"),
                **compiler_common,
            ),
        )(xp, wp, bp)
    else:
        out = pl.pallas_call(
            _linear_kernel_multi_k,
            out_shape=jax.ShapeDtypeStruct((Mp, Np), jnp.float32),
            grid_spec=pltpu.PrefetchScalarGridSpec(
                num_scalar_prefetch=0,
                grid=(Mp // TM, Np // TN, kt),
                in_specs=[
                    pl.BlockSpec((TM, TK), lambda i, j, k: (i, k)),
                    pl.BlockSpec((TK, TN), lambda i, j, k: (k, j)),
                    pl.BlockSpec((1, TN), lambda i, j, k: (0, j)),
                ],
                out_specs=pl.BlockSpec((TM, TN), lambda i, j, k: (i, j)),
                scratch_shapes=[pltpu.VMEM((TM, TN), jnp.float32)],
            ),
            compiler_params=pltpu.CompilerParams(
                dimension_semantics=("parallel", "parallel", "arbitrary"),
                **compiler_common,
            ),
        )(xp, wp, bp)

    return out[:M, :N]


# -----------------------------------------------------------------------------
# Parameters: feat_classifier(feature_dim, class_num, type='linear') + init_weights
# -----------------------------------------------------------------------------
def init_feat_classifier(key, feature_dim=256, class_num=10):
    # nn.Linear weight is (class_num, feature_dim); init_weights applies
    # xavier_normal_ (gain=1) and zeros the bias.  Stored transposed as
    # (feature_dim, class_num) so the kernel computes x @ w directly.
    std = jnp.sqrt(2.0 / (feature_dim + class_num))
    w = std * jax.random.normal(key, (feature_dim, class_num), jnp.float32)
    b = jnp.zeros((class_num,), jnp.float32)
    # TODO(synk): type='wn' (weightNorm) variant — would fold g * v/||v|| into
    # `w` in the wrapper before the same matmul kernel; only the default
    # 'linear' path used by forward() is implemented.
    return {'w': w, 'b': b}


def feat_classifier_forward(params, x):
    """Matches feat_classifier.forward: x -> self.fc(x)."""
    return linear_pallas(x, params['w'], params['b'])


if __name__ == "__main__":
    key = jax.random.PRNGKey(0)
    kp, kx = jax.random.split(key)

    feature_dim, class_num, batch = 256, 10, 8
    params = init_feat_classifier(kp, feature_dim, class_num)
    x = jax.random.normal(kx, (batch, feature_dim), jnp.float32)

    out = feat_classifier_forward(params, x)
    out = jax.block_until_ready(out)
    assert out.shape == (batch, class_num), out.shape
    assert bool(jnp.all(jnp.isfinite(out)))

    # Numerical check against the pure-JAX reference.
    ref = x @ params['w'] + params['b']
    assert bool(jnp.allclose(out, ref, atol=1e-4, rtol=1e-4)), \
        float(jnp.max(jnp.abs(out - ref)))

    # Exercise the tiled / padded path (M not a tile multiple, padded N).
    k2, k3 = jax.random.split(kx)
    x_big = jax.random.normal(k2, (600, feature_dim), jnp.float32)
    out_big = jax.block_until_ready(feat_classifier_forward(params, x_big))
    ref_big = x_big @ params['w'] + params['b']
    assert out_big.shape == (600, class_num)
    assert bool(jnp.allclose(out_big, ref_big, atol=1e-4, rtol=1e-4))

    # Exercise the multi-K accumulator path (K > TK) with a larger head.
    feat2, cls2 = 1536, 40
    params2 = init_feat_classifier(kp, feat2, cls2)
    x2 = jax.random.normal(k3, (64, feat2), jnp.float32)
    out2 = jax.block_until_ready(
        linear_pallas(x2, params2['w'], params2['b'], tk=512))
    ref2 = x2 @ params2['w'] + params2['b']
    assert bool(jnp.allclose(out2, ref2, atol=1e-4, rtol=1e-4))

    print("KERNEL_OK")
</pallas_src>

<mosaic_0001>
module attributes {stable_mosaic.version = 11 : i64} {
  func.func @_linear_kernel_single_k(%arg0: i32, %arg1: i32, %arg2: memref<8x256xf32, #tpu.memory_space<vmem>>, %arg3: memref<256x128xf32, #tpu.memory_space<vmem>>, %arg4: memref<1x128xf32, #tpu.memory_space<vmem>>, %arg5: memref<8x128xf32, #tpu.memory_space<vmem>>) attributes {dimension_semantics = [#tpu.dimension_semantics<parallel>, #tpu.dimension_semantics<parallel>], iteration_bounds = array<i64: 1, 1>, scalar_prefetch = 0 : i64, scratch_operands = 0 : i64, tpu.core_type = #tpu.core_type<tc>, window_params = [{transform_indices = @transform_0, window_bounds = array<i64: 8, 256>}, {transform_indices = @transform_1, window_bounds = array<i64: 256, 128>}, {transform_indices = @transform_2, window_bounds = array<i64: 1, 128>}, {transform_indices = @transform_3, window_bounds = array<i64: 8, 128>}]} {
    %c0 = arith.constant 0 : index
    %c0_0 = arith.constant 0 : index
    %0 = vector.load %arg2[%c0, %c0_0] : memref<8x256xf32, #tpu.memory_space<vmem>>, vector<8x256xf32>
    %c0_1 = arith.constant 0 : index
    %c0_2 = arith.constant 0 : index
    %1 = vector.load %arg3[%c0_1, %c0_2] : memref<256x128xf32, #tpu.memory_space<vmem>>, vector<256x128xf32>
    %cst = arith.constant dense<0.000000e+00> : vector<8x128xf32>
    %2 = tpu.matmul %0, %1, %cst {dimension_numbers = #tpu.dot_dimension_numbers<[1], [0], [0], [1], [0, 0, 1, 1], [], []>} : vector<8x256xf32>, vector<256x128xf32>, vector<8x128xf32> -> vector<8x128xf32>
    %c0_3 = arith.constant 0 : index
    %c0_4 = arith.constant 0 : index
    %3 = vector.load %arg4[%c0_3, %c0_4] : memref<1x128xf32, #tpu.memory_space<vmem>>, vector<1x128xf32>
    %4 = vector.broadcast %3 : vector<1x128xf32> to vector<8x128xf32>
    %5 = arith.addf %2, %4 : vector<8x128xf32>
    %c0_5 = arith.constant 0 : index
    %c0_6 = arith.constant 0 : index
    %6 = vector.load %arg5[%c0_5, %c0_6] : memref<8x128xf32, #tpu.memory_space<vmem>>, vector<8x128xf32>
    tpu.vector_store %arg5[%c0_5, %c0_6], %5 {strides = array<i32>} : memref<8x128xf32, #tpu.memory_space<vmem>>, vector<8x128xf32>,
    return
  }
  func.func @transform_0(%arg0: i32, %arg1: i32) -> (i32, i32) {
    %c0_i32 = arith.constant 0 : i32
    %c0_i32_0 = arith.constant 0 : i32
    return %arg0, %c0_i32 : i32, i32
  }
  func.func @transform_1(%arg0: i32, %arg1: i32) -> (i32, i32) {
    %c0_i32 = arith.constant 0 : i32
    %c0_i32_0 = arith.constant 0 : i32
    return %c0_i32, %arg1 : i32, i32
  }
  func.func @transform_2(%arg0: i32, %arg1: i32) -> (i32, i32) {
    %c0_i32 = arith.constant 0 : i32
    %c0_i32_0 = arith.constant 0 : i32
    return %c0_i32, %arg1 : i32, i32
  }
  func.func @transform_3(%arg0: i32, %arg1: i32) -> (i32, i32) {
    %c0_i32 = arith.constant 0 : i32
    return %arg0, %arg1 : i32, i32
  }
}

</mosaic_0001>

<llo_original>
// kernel: linear_pallas.1
$region0: #{linear_pallas.1}
  #allocation0 [shape = 'u32[]', space=smem, size = 0x4, offset = 0x4, fixed_abs, tag = 'smem constant byte address 0x4 - core index']
  #allocation1 [shape = 'u32[144,128]{1,0:T(1,128)}', space=vmem, size = 0x12000, scoped, tag = 'internal scratch']
  %s0 = inlined_call_operand.vmem [shape: f32[8,256], index: 0, kind: input, shape index: {}]
  %s1 = inlined_call_operand.vmem [shape: f32[256,128], index: 1, kind: input, shape index: {}]
  %s2 = inlined_call_operand.vmem [shape: f32[1,128], index: 2, kind: input, shape index: {}]
  %s3 = inlined_call_operand.hbm [shape: f32[8,128], index: 3, kind: output, shape index: {}]
  %s4 = sld [smem:[#allocation0]]
  $region22: #{linear_pallas.1} parent=0
    _
  %s6 = ssub.s32 1, %s4
  %s7 = scalar_select 0, %s6, %s4
  $region1: #{linear_pallas.1} parent=0
    #allocation2 [shape = 'u8[4096]{0}', space=vmem, size = 0x1000, scoped, tag = 'output window, operand 0, single buffered']
    #allocation3 [shape = 's32[1]{0}', space=sflag, size = 0x4, scoped, tag = 'scoped memory for linear_pallas.1']
    %8 = vsyncpa [#allocation3], 0
    // Predicated region
    $region2: #{linear_pallas.1} parent=1 // pred_check
      _
    $region3: #{linear_pallas.1} parent=1 // pred_check_branch
      %10 = sbr.rel (0) target = $region5
    $region4: #{linear_pallas.1} parent=1 // pred_region
      _
    $region5: #{linear_pallas.1} parent=1 // pred_fallthru
      _
    // Predicated region
    $region6: #{linear_pallas.1} parent=1 // pred_check
      _
    $region7: #{linear_pallas.1} parent=1 // pred_check_branch
      %12 = sbr.rel (0) target = $region9
    $region8: #{linear_pallas.1} parent=1 // pred_region
      _
    $region9: #{linear_pallas.1} parent=1 // pred_fallthru
      _
    // Predicated region
    $region10: #{linear_pallas.1} parent=1 // pred_check
      _
    $region11: #{linear_pallas.1} parent=1 // pred_check_branch
      %14 = sbr.rel (0) target = $region13
    $region12: #{linear_pallas.1} parent=1 // pred_region
      _
    $region13: #{linear_pallas.1} parent=1 // pred_fallthru
      _
    %v15 = vld [vmem:[%s0] sm:$0xff]
    %v16 = vld [vmem:[%s0 + $0x8] sm:$0xff]
    %v17 = vld [vmem:[%s1] sm:$0xff]
    %v18 = vld [vmem:[%s1 + $0x8] sm:$0xff]
    %v19 = vld [vmem:[%s1 + $0x10] sm:$0xff]
    %v20 = vld [vmem:[%s1 + $0x18] sm:$0xff]
    %v21 = vld [vmem:[%s1 + $0x20] sm:$0xff]
    %v22 = vld [vmem:[%s1 + $0x28] sm:$0xff]
    %v23 = vld [vmem:[%s1 + $0x30] sm:$0xff]
    %v24 = vld [vmem:[%s1 + $0x38] sm:$0xff]
    %v25 = vld [vmem:[%s1 + $0x40] sm:$0xff]
    %v26 = vld [vmem:[%s1 + $0x48] sm:$0xff]
    %v27 = vld [vmem:[%s1 + $0x50] sm:$0xff]
    %v28 = vld [vmem:[%s1 + $0x58] sm:$0xff]
    %v29 = vld [vmem:[%s1 + $0x60] sm:$0xff]
    %v30 = vld [vmem:[%s1 + $0x68] sm:$0xff]
    %v31 = vld [vmem:[%s1 + $0x70] sm:$0xff]
    %v32 = vld [vmem:[%s1 + $0x78] sm:$0xff]
    %v33 = vld [vmem:[%s1 + $0x80] sm:$0xff]
    %v34 = vld [vmem:[%s1 + $0x88] sm:$0xff]
    %v35 = vld [vmem:[%s1 + $0x90] sm:$0xff]
    %v36 = vld [vmem:[%s1 + $0x98] sm:$0xff]
    %v37 = vld [vmem:[%s1 + $0xa0] sm:$0xff]
    %v38 = vld [vmem:[%s1 + $0xa8] sm:$0xff]
    %v39 = vld [vmem:[%s1 + $0xb0] sm:$0xff]
    %v40 = vld [vmem:[%s1 + $0xb8] sm:$0xff]
    %v41 = vld [vmem:[%s1 + $0xc0] sm:$0xff]
    %v42 = vld [vmem:[%s1 + $0xc8] sm:$0xff]
    %v43 = vld [vmem:[%s1 + $0xd0] sm:$0xff]
    %v44 = vld [vmem:[%s1 + $0xd8] sm:$0xff]
    %v45 = vld [vmem:[%s1 + $0xe0] sm:$0xff]
    %v46 = vld [vmem:[%s1 + $0xe8] sm:$0xff]
    %v47 = vld [vmem:[%s1 + $0xf0] sm:$0xff]
    %v48 = vld [vmem:[%s1 + $0xf8] sm:$0xff]
    %v49 = vld [vmem:[%s2] sm:$0x1]
    %v51 = vlaneseq
    %v52 = vshrl.u32 %v51, 7
    %v53 = vsub.s32 0, %v52
    %v54 = vrot.slane %v49, %v53
    %56 = vmatprep.subr.mxu0 0.0
    %57 = vmatpush1.msra.mxu0 %v17
    %58 = vmatprep.subr.mxu0 0.0
    %59 = vmatpush1.msra.mxu0 %v18
    %60 = vmatprep.subr.mxu0 0.0
    %61 = vmatpush1.msra.mxu0 %v19
    %62 = vmatprep.subr.mxu0 0.0
    %63 = vmatpush1.msra.mxu0 %v20
    %64 = vmatprep.subr.mxu0 0.0
    %65 = vmatpush1.msra.mxu0 %v21
    %66 = vmatprep.subr.mxu0 0.0
    %67 = vmatpush1.msra.mxu0 %v22
    %68 = vmatprep.subr.mxu0 0.0
    %69 = vmatpush1.msra.mxu0 %v23
    %70 = vmatprep.subr.mxu0 0.0
    %71 = vmatpush1.msra.mxu0 %v24
    %72 = vmatprep.subr.mxu0 0.0
    %73 = vmatpush1.msra.mxu0 %v25
    %74 = vmatprep.subr.mxu0 0.0
    %75 = vmatpush1.msra.mxu0 %v26
    %76 = vmatprep.subr.mxu0 0.0
    %77 = vmatpush1.msra.mxu0 %v27
    %78 = vmatprep.subr.mxu0 0.0
    %79 = vmatpush1.msra.mxu0 %v28
    %80 = vmatprep.subr.mxu0 0.0
    %81 = vmatpush1.msra.mxu0 %v29
    %82 = vmatprep.subr.mxu0 0.0
    %83 = vmatpush1.msra.mxu0 %v30
    %84 = vmatprep.subr.mxu0 0.0
    %85 = vmatpush1.msra.mxu0 %v31
    %86 = vmatprep.subr.mxu0 0.0
    %87 = vmatpush1.msra.mxu0 %v32
    %88 = vmatprep.subr.mxu0 0.0
    %89 = vmatpush1.msra.mxu0 %v33
    %90 = vmatprep.subr.mxu0 0.0
    %91 = vmatpush1.msra.mxu0 %v34
    %92 = vmatprep.subr.mxu0 0.0
    %93 = vmatpush1.msra.mxu0 %v35
    %94 = vmatprep.subr.mxu0 0.0
    %95 = vmatpush1.msra.mxu0 %v36
    %96 = vmatprep.subr.mxu0 0.0
    %97 = vmatpush1.msra.mxu0 %v37
    %98 = vmatprep.subr.mxu0 0.0
    %99 = vmatpush1.msra.mxu0 %v38
    %100 = vmatprep.subr.mxu0 0.0
    %101 = vmatpush1.msra.mxu0 %v39
    %102 = vmatprep.subr.mxu0 0.0
    %103 = vmatpush1.msra.mxu0 %v40
    %104 = vmatprep.subr.mxu0 0.0
    %105 = vmatpush1.msra.mxu0 %v41
    %106 = vmatprep.subr.mxu0 0.0
    %107 = vmatpush1.msra.mxu0 %v42
    %108 = vmatprep.subr.mxu0 0.0
    %109 = vmatpush1.msra.mxu0 %v43
    %110 = vmatprep.subr.mxu0 0.0
    %111 = vmatpush1.msra.mxu0 %v44
    %112 = vmatprep.subr.mxu0 0.0
    %113 = vmatpush1.msra.mxu0 %v45
    %114 = vmatprep.subr.mxu0 0.0
    %115 = vmatpush1.msra.mxu0 %v46
    %116 = vmatprep.subr.mxu0 0.0
    %117 = vmatpush1.msra.mxu0 %v47
    %118 = vmatprep.subr.mxu0 0.0
    %119 = vmatpush1.msra.mxu0 %v48
    %120 = vmatprep.mubr.f32.mxu0 %v16
    %121 = vmatmul.mubr.f32.gmra.mrb[0].mxu0 %v15
    %v122 = vpop.f32.mrb[0].mxu0
    %v123 = vadd.f32 %v54, %v122
    %v124 = vpop.f32.mrb[0].mxu0
    %125 = vdwg.mxu0
    %126 = vst [vmem:[#allocation2] sm:$0xff] %v123
    // Predicated region
    $region14: #{linear_pallas.1} parent=1 // pred_check
      _
    $region15: #{linear_pallas.1} parent=1 // pred_check_branch
      %128 = sbr.rel (0) target = $region17
    $region16: #{linear_pallas.1} parent=1 // pred_region
      %s130 = ssub.s32 128, 128
      %131 = vsyncadd [#allocation3], %s130
      %s133 = sshll.u32 [#allocation2], 4
      %s134 = int_to_ptr.vmem [resolvable:$true] %s133
      %136 = dma.vmem_to_hbm [thread:$0]  %s134, 128, %s3, [#allocation3]
    $region17: #{linear_pallas.1} parent=1 // pred_fallthru
      _
    // Predicated region
    $region18: #{linear_pallas.1} parent=1 // pred_check
      _
    $region19: #{linear_pallas.1} parent=1 // pred_check_branch
      %138 = sbr.rel (0) target = $region21
    $region20: #{linear_pallas.1} parent=1 // pred_region
      %139 = dma.done [#allocation3], 128
    $region21: #{linear_pallas.1} parent=1 // pred_fallthru
      _
    %140 = vsyncpa [#allocation3], 1

</llo_original>
